<compile_context>
chip_gen: v7x
topology: tpu7x:2x2x1
jax: 0.10.0
libtpu: 0.0.40
codegen_flags: <defaults>
</compile_context>

<pallas_src>
import functools

import jax
import jax.numpy as jnp
from jax import lax
from jax.experimental import pallas as pl
from jax.experimental.pallas import tpu as pltpu


def _round_up(n, m):
    return ((n + m - 1) // m) * m


def _device_kind():
    try:
        return jax.devices()[0].device_kind.lower()
    except Exception:  # defensive: never let chip detection break the kernel
        return ""


def _pick_row_tile(n_rows, d, itemsize, tm_request):
    """Largest row tile whose double-buffered x block fits the scoped-VMEM
    window of the current TPU generation (without overshooting the problem)."""
    kind = _device_kind()
    if "v7" in kind:
        # 64 MiB physical / 32 MiB default scoped VMEM, 3.2 TB/s HBM: bigger
        # tiles amortize the fixed per-grid-step cost; keep x's two buffers
        # <= 24 MiB so weight/output buffers + compiler scratch still fit.
        budget_bytes, tm_default = 24 << 20, 2048
    elif "v6" in kind:
        budget_bytes, tm_default = 20 << 20, 1024
    else:
        # v5e default scoped VMEM is 16 MiB -> stay well under it.
        budget_bytes, tm_default = 12 << 20, 1024

    tm = tm_request if tm_request is not None else tm_default
    tm = _round_up(max(tm, 128), 128)

    # VMEM clamp: 2 (double buffer) * tm * d * itemsize bytes for the x tile.
    tm_vmem_cap = max(128, (budget_bytes // (2 * itemsize * d)) // 128 * 128)
    tm = min(tm, tm_vmem_cap)

    # Don't use a tile bigger than the (lane-padded) problem.
    tm = min(tm, _round_up(n_rows, 128))

    # v7x has 2 TensorCores; the "parallel" grid axis is sharded across them,
    # so keep at least 2 grid steps when there is enough work.
    if "v7" in kind and n_rows >= 256:
        tm = min(tm, _round_up(pl.cdiv(n_rows, 2), 128))

    return max(128, (tm // 128) * 128)


def _linear_kernel(w_ref, x_ref, o_ref):
    # w_ref: (1, D)  weight row.  Constant block index -> DMA'd once, not
    #                re-fetched every grid step.
    # x_ref: (TM, D) tile of input rows (the last tile may be partial; its
    #                garbage rows only feed output lanes that are sliced off).
    # o_ref: (1, TM) lane-dense output tile (always a full, unmasked store).
    #
    # q·kᵀ-style "NT" contraction over the feature dim of both operands.  This
    # avoids any relayout of the big x tile (the transpose is absorbed by the
    # MXU operand push, not an XLU vxpose), and Mosaic masks the sub-128 tail
    # of an unaligned D internally, so no zero padding of x or w is required.
    o_ref[...] = lax.dot_general(
        w_ref[...],
        x_ref[...],
        dimension_numbers=(((1,), (1,)), ((), ())),
        preferred_element_type=jnp.float32,
    ).astype(o_ref.dtype)


@functools.partial(jax.jit, static_argnames=("tm", "compute_dtype"))
def linear_regression_forward(x, w, *, tm=None, compute_dtype=None):
    """x: [N, d], w: [1, d]  ->  [N]   (== torch Linear(d,1,bias=False) + squeeze).

    compute_dtype: optionally stream x/w as e.g. jnp.bfloat16 — halves the HBM
    traffic of this bandwidth-bound GEMV while the MXU accumulates in f32.
    (Ideally the producer already emits that dtype; casting here adds a copy.)
    """
    N, D = x.shape
    assert w.shape == (1, D), f"weight must be (1, {D}), got {w.shape}"
    out_dtype = x.dtype

    if compute_dtype is not None and jnp.dtype(compute_dtype) != x.dtype:
        x = x.astype(compute_dtype)
        w = w.astype(compute_dtype)

    itemsize = jnp.dtype(x.dtype).itemsize
    tm_eff = _pick_row_tile(N, D, itemsize, tm)

    num_tiles = pl.cdiv(N, tm_eff)
    n_out = num_tiles * tm_eff  # lane-padded output; only (n_out - N) extra elems

    out = pl.pallas_call(
        _linear_kernel,
        out_shape=jax.ShapeDtypeStruct((1, n_out), out_dtype),
        grid_spec=pltpu.PrefetchScalarGridSpec(
            num_scalar_prefetch=0,
            grid=(num_tiles,),
            in_specs=[
                pl.BlockSpec((1, D), lambda i: (0, 0)),       # weight (constant block)
                pl.BlockSpec((tm_eff, D), lambda i: (i, 0)),  # x row tile
            ],
            out_specs=pl.BlockSpec((1, tm_eff), lambda i: (0, i)),
        ),
        compiler_params=pltpu.CompilerParams(
            dimension_semantics=("parallel",),
        ),
        cost_estimate=pl.CostEstimate(
            flops=2 * N * D,
            # x streamed once + weight fetched once + output written once.
            bytes_accessed=itemsize * (N * D + D)
            + jnp.dtype(out_dtype).itemsize * N,
            transcendentals=0,
        ),
    )(w, x)

    # torch's .squeeze(): drop the size-1 output-feature dim; trim lane padding.
    return out[0, :N]


def init_linear_weight(key, d, dtype=jnp.float32):
    """Deterministic init mimicking nn.Linear default: U(-1/sqrt(d), 1/sqrt(d)).

    nn.Linear weight is [out_features=1, in_features=d]; keep that (1, d)
    layout directly (lane-dense row)."""
    bound = 1.0 / jnp.sqrt(jnp.asarray(d, dtype))
    return jax.random.uniform(key, (1, d), dtype=dtype, minval=-bound, maxval=bound)


if __name__ == "__main__":
    key = jax.random.PRNGKey(0)

    def reference(x, w):
        # Same math as torch: x @ W^T, then squeeze the size-1 feature dim.
        return (x @ w.T)[:, 0]

    # (N, d, tm_override, compute_dtype, tolerance)
    cases = [
        (16, 256, None, None, 1e-5),           # small aligned sanity case
        (50, 1000, None, None, 1e-4),          # module's d=1000: ragged D + ragged N
        (300, 1000, 128, None, 1e-4),          # multi-step grid + partial last tile
        (64, 1000, None, jnp.bfloat16, 2e-2),  # optional bf16-streaming path
    ]

    for n_rows, d, tm, cdt, tol in cases:
        key, kx, kw = jax.random.split(key, 3)
        x = jax.random.normal(kx, (n_rows, d), dtype=jnp.float32)
        w = init_linear_weight(kw, d)

        y = linear_regression_forward(x, w, tm=tm, compute_dtype=cdt)
        jax.block_until_ready(y)

        y_ref = reference(x, w)
        assert y.shape == (n_rows,), (y.shape, n_rows)
        assert jnp.allclose(y, y_ref, atol=tol, rtol=tol), (
            f"mismatch for N={n_rows}, d={d}, compute_dtype={cdt}"
        )

    print("KERNEL_OK")
</pallas_src>

<mosaic_0001>
module attributes {stable_mosaic.version = 11 : i64} {
  func.func @_linear_kernel(%arg0: i32, %arg1: memref<1x256xf32, #tpu.memory_space<vmem>>, %arg2: memref<128x256xf32, #tpu.memory_space<vmem>>, %arg3: memref<1x128xf32, #tpu.memory_space<vmem>>) attributes {dimension_semantics = [#tpu.dimension_semantics<parallel>], iteration_bounds = array<i64: 1>, scalar_prefetch = 0 : i64, scratch_operands = 0 : i64, tpu.core_type = #tpu.core_type<tc>, window_params = [{pipeline_mode = #tpu.pipeline_mode<synchronous>, transform_indices = @transform_0, window_bounds = array<i64: 1, 256>}, {transform_indices = @transform_1, window_bounds = array<i64: 128, 256>}, {transform_indices = @transform_2, window_bounds = array<i64: 1, 128>}]} {
    %c0 = arith.constant 0 : index
    %c0_0 = arith.constant 0 : index
    %0 = vector.load %arg1[%c0, %c0_0] : memref<1x256xf32, #tpu.memory_space<vmem>>, vector<1x256xf32>
    %c0_1 = arith.constant 0 : index
    %c0_2 = arith.constant 0 : index
    %1 = vector.load %arg2[%c0_1, %c0_2] : memref<128x256xf32, #tpu.memory_space<vmem>>, vector<128x256xf32>
    %cst = arith.constant dense<0.000000e+00> : vector<1x128xf32>
    %2 = tpu.matmul %0, %1, %cst {dimension_numbers = #tpu.dot_dimension_numbers<[1], [1], [0], [0], [0, 0, 1, 0], [], []>} : vector<1x256xf32>, vector<128x256xf32>, vector<1x128xf32> -> vector<1x128xf32>
    %c0_3 = arith.constant 0 : index
    %c0_4 = arith.constant 0 : index
    %3 = vector.load %arg3[%c0_3, %c0_4] : memref<1x128xf32, #tpu.memory_space<vmem>>, vector<1x128xf32>
    tpu.vector_store %arg3[%c0_3, %c0_4], %2 {strides = array<i32>} : memref<1x128xf32, #tpu.memory_space<vmem>>, vector<1x128xf32>,
    return
  }
  func.func @transform_0(%arg0: i32) -> (i32, i32) {
    %c0_i32 = arith.constant 0 : i32
    %c0_i32_0 = arith.constant 0 : i32
    %c0_i32_1 = arith.constant 0 : i32
    return %c0_i32, %c0_i32_0 : i32, i32
  }
  func.func @transform_1(%arg0: i32) -> (i32, i32) {
    %c0_i32 = arith.constant 0 : i32
    %c0_i32_0 = arith.constant 0 : i32
    return %arg0, %c0_i32 : i32, i32
  }
  func.func @transform_2(%arg0: i32) -> (i32, i32) {
    %c0_i32 = arith.constant 0 : i32
    %c0_i32_0 = arith.constant 0 : i32
    return %c0_i32, %arg0 : i32, i32
  }
}

</mosaic_0001>

<llo_original>
// kernel: linear_regression_forward.1
$region0: #{linear_regression_forward.1}
  #allocation0 [shape = 'u32[]', space=smem, size = 0x4, offset = 0x4, fixed_abs, tag = 'smem constant byte address 0x4 - core index']
  #allocation1 [shape = 'u32[144,128]{1,0:T(1,128)}', space=vmem, size = 0x12000, scoped, tag = 'internal scratch']
  %s0 = inlined_call_operand.vmem [shape: f32[1,256], index: 0, kind: input, shape index: {}]
  %s1 = inlined_call_operand.hbm [shape: f32[16,256], index: 1, kind: input, shape index: {}]
  %s2 = inlined_call_operand.vmem [shape: f32[1,128], index: 2, kind: output, shape index: {}]
  %s3 = sld [smem:[#allocation0]]
  $region22: #{linear_regression_forward.1} parent=0
    _
  %s5 = ssub.s32 1, %s3
  %s6 = scalar_select 0, %s5, %s3
  $region1: #{linear_regression_forward.1} parent=0
    #allocation2 [shape = 'u8[131072]{0}', space=vmem, size = 0x20000, scoped, tag = 'input window, operand 1, single buffered']
    #allocation3 [shape = 's32[1]{0}', space=sflag, size = 0x4, scoped, tag = 'scoped memory for linear_regression_forward.1']
    %7 = vsyncpa [#allocation3], 0
    // Predicated region
    $region2: #{linear_regression_forward.1} parent=1 // pred_check
      _
    $region3: #{linear_regression_forward.1} parent=1 // pred_check_branch
      %9 = sbr.rel (0) target = $region5
    $region4: #{linear_regression_forward.1} parent=1 // pred_region
      _
    $region5: #{linear_regression_forward.1} parent=1 // pred_fallthru
      _
    // Predicated region
    $region6: #{linear_regression_forward.1} parent=1 // pred_check
      _
    $region7: #{linear_regression_forward.1} parent=1 // pred_check_branch
      %11 = sbr.rel (0) target = $region9
    $region8: #{linear_regression_forward.1} parent=1 // pred_region
      %s13 = ssub.s32 4096, 512
      %14 = vsyncadd [#allocation3], %s13
      %s15 = sshll.u32 [#allocation2], 4
      %s16 = int_to_ptr.vmem [resolvable:$true] %s15
      %21 = dma.hbm_to_vmem [thread:$0]  %s1, 512, %s16, [#allocation3], 256, 256, 16
    $region9: #{linear_regression_forward.1} parent=1 // pred_fallthru
      _
    // Predicated region
    $region10: #{linear_regression_forward.1} parent=1 // pred_check
      _
    $region11: #{linear_regression_forward.1} parent=1 // pred_check_branch
      %23 = sbr.rel (0) target = $region13
    $region12: #{linear_regression_forward.1} parent=1 // pred_region
      %24 = dma.done [#allocation3], 4096
    $region13: #{linear_regression_forward.1} parent=1 // pred_fallthru
      _
    %v25 = vld [vmem:[%s0] sm:$0x3]
    %v26 = vld [vmem:[#allocation2] sm:$0xff]
    %v27 = vld [vmem:[#allocation2 + $0x8] sm:$0xff]
    %v28 = vld [vmem:[#allocation2 + $0x10] sm:$0xff]
    %v29 = vld [vmem:[#allocation2 + $0x18] sm:$0xff]
    %v30 = vld [vmem:[#allocation2 + $0x20] sm:$0xff]
    %v31 = vld [vmem:[#allocation2 + $0x28] sm:$0xff]
    %v32 = vld [vmem:[#allocation2 + $0x30] sm:$0xff]
    %v33 = vld [vmem:[#allocation2 + $0x38] sm:$0xff]
    %v34 = vld [vmem:[#allocation2 + $0x40] sm:$0xff]
    %v35 = vld [vmem:[#allocation2 + $0x48] sm:$0xff]
    %v36 = vld [vmem:[#allocation2 + $0x50] sm:$0xff]
    %v37 = vld [vmem:[#allocation2 + $0x58] sm:$0xff]
    %v38 = vld [vmem:[#allocation2 + $0x60] sm:$0xff]
    %v39 = vld [vmem:[#allocation2 + $0x68] sm:$0xff]
    %v40 = vld [vmem:[#allocation2 + $0x70] sm:$0xff]
    %v41 = vld [vmem:[#allocation2 + $0x78] sm:$0xff]
    %v42 = vld [vmem:[#allocation2 + $0x80] sm:$0xff]
    %v43 = vld [vmem:[#allocation2 + $0x88] sm:$0xff]
    %v44 = vld [vmem:[#allocation2 + $0x90] sm:$0xff]
    %v45 = vld [vmem:[#allocation2 + $0x98] sm:$0xff]
    %v46 = vld [vmem:[#allocation2 + $0xa0] sm:$0xff]
    %v47 = vld [vmem:[#allocation2 + $0xa8] sm:$0xff]
    %v48 = vld [vmem:[#allocation2 + $0xb0] sm:$0xff]
    %v49 = vld [vmem:[#allocation2 + $0xb8] sm:$0xff]
    %v50 = vld [vmem:[#allocation2 + $0xc0] sm:$0xff]
    %v51 = vld [vmem:[#allocation2 + $0xc8] sm:$0xff]
    %v52 = vld [vmem:[#allocation2 + $0xd0] sm:$0xff]
    %v53 = vld [vmem:[#allocation2 + $0xd8] sm:$0xff]
    %v54 = vld [vmem:[#allocation2 + $0xe0] sm:$0xff]
    %v55 = vld [vmem:[#allocation2 + $0xe8] sm:$0xff]
    %v56 = vld [vmem:[#allocation2 + $0xf0] sm:$0xff]
    %v57 = vld [vmem:[#allocation2 + $0xf8] sm:$0xff]
    %v59 = vlaneseq
    %v60 = vshrl.u32 %v59, 7
    %v61 = vsub.s32 0, %v60
    %v62 = vrot.slane %v25, %v61
    %v63 = vlaneseq
    %v64 = vshrl.u32 %v63, 7
    %v65 = vsub.s32 1, %v64
    %v66 = vrot.slane %v25, %v65
    %69 = vmatprep.subr.mxu0 %v27
    %70 = vmatpush1.xpose.msra.mxu0 %v26
    %71 = vmatprep.subr.mxu0 %v29
    %72 = vmatpush1.xpose.msra.mxu0 %v28
    %73 = vmatprep.subr.mxu0 %v31
    %74 = vmatpush1.xpose.msra.mxu0 %v30
    %75 = vmatprep.subr.mxu0 %v33
    %76 = vmatpush1.xpose.msra.mxu0 %v32
    %77 = vmatprep.subr.mxu0 %v35
    %78 = vmatpush1.xpose.msra.mxu0 %v34
    %79 = vmatprep.subr.mxu0 %v37
    %80 = vmatpush1.xpose.msra.mxu0 %v36
    %81 = vmatprep.subr.mxu0 %v39
    %82 = vmatpush1.xpose.msra.mxu0 %v38
    %83 = vmatprep.subr.mxu0 %v41
    %84 = vmatpush1.xpose.msra.mxu0 %v40
    %85 = vmatprep.subr.mxu0 %v43
    %86 = vmatpush1.xpose.msra.mxu0 %v42
    %87 = vmatprep.subr.mxu0 %v45
    %88 = vmatpush1.xpose.msra.mxu0 %v44
    %89 = vmatprep.subr.mxu0 %v47
    %90 = vmatpush1.xpose.msra.mxu0 %v46
    %91 = vmatprep.subr.mxu0 %v49
    %92 = vmatpush1.xpose.msra.mxu0 %v48
    %93 = vmatprep.subr.mxu0 %v51
    %94 = vmatpush1.xpose.msra.mxu0 %v50
    %95 = vmatprep.subr.mxu0 %v53
    %96 = vmatpush1.xpose.msra.mxu0 %v52
    %97 = vmatprep.subr.mxu0 %v55
    %98 = vmatpush1.xpose.msra.mxu0 %v54
    %99 = vmatprep.subr.mxu0 %v57
    %100 = vmatpush1.xpose.msra.mxu0 %v56
    %101 = vmatprep.subr.mxu0 0.0
    %102 = vmatpush1.xpose.msra.mxu0 0.0
    %103 = vmatprep.subr.mxu0 0.0
    %104 = vmatpush1.xpose.msra.mxu0 0.0
    %105 = vmatprep.subr.mxu0 0.0
    %106 = vmatpush1.xpose.msra.mxu0 0.0
    %107 = vmatprep.subr.mxu0 0.0
    %108 = vmatpush1.xpose.msra.mxu0 0.0
    %109 = vmatprep.subr.mxu0 0.0
    %110 = vmatpush1.xpose.msra.mxu0 0.0
    %111 = vmatprep.subr.mxu0 0.0
    %112 = vmatpush1.xpose.msra.mxu0 0.0
    %113 = vmatprep.subr.mxu0 0.0
    %114 = vmatpush1.xpose.msra.mxu0 0.0
    %115 = vmatprep.subr.mxu0 0.0
    %116 = vmatpush1.xpose.msra.mxu0 0.0
    %117 = vmatprep.subr.mxu0 0.0
    %118 = vmatpush1.xpose.msra.mxu0 0.0
    %119 = vmatprep.subr.mxu0 0.0
    %120 = vmatpush1.xpose.msra.mxu0 0.0
    %121 = vmatprep.subr.mxu0 0.0
    %122 = vmatpush1.xpose.msra.mxu0 0.0
    %123 = vmatprep.subr.mxu0 0.0
    %124 = vmatpush1.xpose.msra.mxu0 0.0
    %125 = vmatprep.subr.mxu0 0.0
    %126 = vmatpush1.xpose.msra.mxu0 0.0
    %127 = vmatprep.subr.mxu0 0.0
    %128 = vmatpush1.xpose.msra.mxu0 0.0
    %129 = vmatprep.subr.mxu0 0.0
    %130 = vmatpush1.xpose.msra.mxu0 0.0
    %131 = vmatprep.subr.mxu0 0.0
    %132 = vmatpush1.xpose.msra.mxu0 0.0
    %133 = vmatprep.mubr.f32.mxu0 %v66
    %134 = vmatmul.mubr.f32.gmra.mrb[0].mxu0 %v62
    %v135 = vpop.f32.mrb[0].mxu0
    %v136 = vadd.f32 0.0, %v135
    %v137 = vpop.f32.mrb[0].mxu0
    %138 = vdwg.mxu0
    %139 = vst [vmem:[%s2] sm:$0x1] %v136
    // Predicated region
    $region14: #{linear_regression_forward.1} parent=1 // pred_check
      _
    $region15: #{linear_regression_forward.1} parent=1 // pred_check_branch
      %141 = sbr.rel (0) target = $region17
    $region16: #{linear_regression_forward.1} parent=1 // pred_region
      _
    $region17: #{linear_regression_forward.1} parent=1 // pred_fallthru
      _
    // Predicated region
    $region18: #{linear_regression_forward.1} parent=1 // pred_check
      _
    $region19: #{linear_regression_forward.1} parent=1 // pred_check_branch
      %143 = sbr.rel (0) target = $region21
    $region20: #{linear_regression_forward.1} parent=1 // pred_region
      _
    $region21: #{linear_regression_forward.1} parent=1 // pred_fallthru
      _
    %144 = vsyncpa [#allocation3], 1

</llo_original>
